<compile_context>
chip_gen: v7x
topology: tpu7x:2x2x1
jax: 0.10.0
libtpu: 0.0.40
codegen_flags: <defaults>
</compile_context>

<pallas_src>
import math

import jax
import jax.numpy as jnp
from jax.experimental import pallas as pl
from jax.experimental.pallas import tpu as pltpu


def kelso_attention(hidden_states, mask, positions, params, *,
                    num_heads, head_dim, pos_base,
                    compute_dtype=jnp.float32, block_q=None):
    """Pallas TPU implementation of Kelso_Attention.forward.

    hidden_states : (bsz, seq, hidden) f32
    mask          : (bsz, seq, seq)    f32 additive mask (broadcast over heads)
    positions     : (bsz, seq)         int positions for the rotary embedding
    params        : dict of torch-layout nn.Linear weights (out_features, in_features)
    compute_dtype : jnp.float32 (exact) or jnp.bfloat16 (fast MXU path)

    Returns (attn_output (bsz, seq, hidden) f32,
             attn_weights (bsz, num_heads, seq, seq) f32).
    """
    bsz, seq, hidden = hidden_states.shape
    assert head_dim % 2 == 0, "rotary embedding needs an even head_dim"
    hd = num_heads * head_dim
    half = head_dim // 2
    scale = 1.0 / math.sqrt(head_dim)
    approx_recip = compute_dtype != jnp.float32   # exact recip on the f32 path

    # q-block tile size: largest "nice" divisor of seq (full seq for small seq).
    if block_q is None:
        block_q = seq
        for cand in (512, 256, 128):
            if seq > cand and seq % cand == 0:
                block_q = cand
                break
    assert seq % block_q == 0
    n_qb = seq // block_q

    # Weight prep (plain-JAX glue, free at trace time):
    #   torch nn.Linear weights are (out, in) -> transpose so kernel does x @ W.
    #   Fuse Wq|Wk|Wv into a single (hidden, 3*H*D) operand; reshape Wo to
    #   (H, D, hidden) so each head's o_proj slice is a leading-axis index.
    wqkv = jnp.concatenate(
        [params["q_proj"].T, params["k_proj"].T, params["v_proj"].T],
        axis=1).astype(compute_dtype)                       # (hidden, 3*H*D)
    wo3 = params["o_proj"].T.reshape(num_heads, head_dim, hidden).astype(compute_dtype)

    # Rotary tables gathered at `positions` (kept f32 for RoPE precision).
    inv_freq = 1.0 / (pos_base ** (jnp.arange(0, head_dim, 2, dtype=jnp.float32)
                                   / head_dim))             # (D/2,)
    freqs = positions.astype(jnp.float32)[..., None] * inv_freq  # (bsz, seq, D/2)
    emb = jnp.concatenate([freqs, freqs], axis=-1)               # (bsz, seq, D)
    cos = jnp.cos(emb)
    sin = jnp.sin(emb)

    x = hidden_states.astype(compute_dtype)
    mask = mask.astype(jnp.float32)

    def kernel(x_ref, wqkv_ref, wo_ref, cos_ref, sin_ref, mask_ref,
               out_ref, attw_ref, q_scr, k_scr, v_scr, acc_ref):
        qb = pl.program_id(1)
        h = pl.program_id(2)

        # --- once per batch element: fused QKV projection + RoPE into scratch ---
        @pl.when(jnp.logical_and(qb == 0, h == 0))
        def _project_and_rope():
            xb = x_ref[0]                                              # (seq, hidden)
            qkv = jnp.dot(xb, wqkv_ref[...],
                          preferred_element_type=jnp.float32)          # (seq, 3*H*D) f32
            cos_b = cos_ref[0]                                         # (seq, D)
            sin_b = sin_ref[0]
            for hi in range(num_heads):                                # tiny static loop
                q_i = qkv[:, hi * head_dim:(hi + 1) * head_dim]
                k_i = qkv[:, (num_heads + hi) * head_dim:(num_heads + hi + 1) * head_dim]
                v_i = qkv[:, (2 * num_heads + hi) * head_dim:(2 * num_heads + hi + 1) * head_dim]
                # rotated = cat(-x_hi, x_lo); rope(x) = x*cos + rotated*sin
                q_rot = jnp.concatenate([-q_i[:, half:], q_i[:, :half]], axis=-1)
                k_rot = jnp.concatenate([-k_i[:, half:], k_i[:, :half]], axis=-1)
                # fold the 1/sqrt(D) scale into Q (RoPE is linear, so equivalent).
                q_scr[hi] = ((q_i * cos_b + q_rot * sin_b) * scale).astype(compute_dtype)
                k_scr[hi] = (k_i * cos_b + k_rot * sin_b).astype(compute_dtype)
                v_scr[hi] = v_i.astype(compute_dtype)

        # --- per (q-block, head) attention tile ---
        q_start = pl.multiple_of(qb * block_q, block_q)
        qh = q_scr[h, pl.ds(q_start, block_q), :]                      # (block_q, D)
        kh = k_scr[h]                                                  # (seq, D)
        vh = v_scr[h]                                                  # (seq, D)

        logits = jnp.dot(qh, kh.T, preferred_element_type=jnp.float32)  # (block_q, seq)
        logits = logits + mask_ref[0]
        m = jnp.max(logits, axis=-1, keepdims=True)
        p = jnp.exp(logits - m)
        denom = jnp.sum(p, axis=-1, keepdims=True)
        w = p * pl.reciprocal(denom, approx=approx_recip)               # softmax weights
        attw_ref[0, 0] = w                                              # f32, as in PyTorch

        attn_h = jnp.dot(w.astype(compute_dtype), vh,
                         preferred_element_type=jnp.float32)            # (block_q, D)
        o_contrib = jnp.dot(attn_h.astype(compute_dtype), wo_ref[h],
                            preferred_element_type=jnp.float32)         # (block_q, hidden)

        # accumulate o_proj over heads in a small f32 scratch (no concat).
        @pl.when(h == 0)
        def _init_acc():
            acc_ref[...] = jnp.zeros_like(acc_ref)

        acc_ref[...] += o_contrib

        @pl.when(h == num_heads - 1)
        def _write_out():
            out_ref[0] = acc_ref[...].astype(out_ref.dtype)

    out, attw = pl.pallas_call(
        kernel,
        out_shape=(
            jax.ShapeDtypeStruct((bsz, seq, hidden), jnp.float32),
            jax.ShapeDtypeStruct((bsz, num_heads, seq, seq), jnp.float32),
        ),
        grid_spec=pltpu.PrefetchScalarGridSpec(
            num_scalar_prefetch=0,
            grid=(bsz, n_qb, num_heads),
            in_specs=[
                # x: re-DMA'd only when the batch index changes.
                pl.BlockSpec((1, seq, hidden), lambda b, qb, h: (b, 0, 0)),
                # weights: grid-constant index maps -> resident across all steps.
                pl.BlockSpec((hidden, 3 * hd), lambda b, qb, h: (0, 0)),
                pl.BlockSpec((num_heads, head_dim, hidden), lambda b, qb, h: (0, 0, 0)),
                # rotary tables (per batch element).
                pl.BlockSpec((1, seq, head_dim), lambda b, qb, h: (b, 0, 0)),
                pl.BlockSpec((1, seq, head_dim), lambda b, qb, h: (b, 0, 0)),
                # mask: streamed per (batch, q-block) tile, reused across heads.
                pl.BlockSpec((1, block_q, seq), lambda b, qb, h: (b, qb, 0)),
            ],
            out_specs=[
                pl.BlockSpec((1, block_q, hidden), lambda b, qb, h: (b, qb, 0)),
                pl.BlockSpec((1, 1, block_q, seq), lambda b, qb, h: (b, h, qb, 0)),
            ],
            scratch_shapes=[
                pltpu.VMEM((num_heads, seq, head_dim), compute_dtype),  # roped+scaled Q
                pltpu.VMEM((num_heads, seq, head_dim), compute_dtype),  # roped K
                pltpu.VMEM((num_heads, seq, head_dim), compute_dtype),  # V
                pltpu.VMEM((block_q, hidden), jnp.float32),             # o_proj accumulator
            ],
        ),
        compiler_params=pltpu.CompilerParams(
            # batch axis shards across TensorCores; q-block/head carry scratch state.
            dimension_semantics=("parallel", "arbitrary", "arbitrary"),
            # explicit cap sized to leave headroom even on v7x's 64 MiB VMEM.
            vmem_limit_bytes=48 * 1024 * 1024,
        ),
    )(x, wqkv, wo3, cos, sin, mask)
    return out, attw


def _reference(hidden_states, mask, positions, params, *,
               num_heads, head_dim, pos_base):
    """Pure-JAX reference mirroring the PyTorch forward (for verification)."""
    bsz, seq, hidden = hidden_states.shape
    q = hidden_states @ params["q_proj"].T
    k = hidden_states @ params["k_proj"].T
    v = hidden_states @ params["v_proj"].T
    q = q.reshape(bsz, seq, num_heads, head_dim).transpose(0, 2, 1, 3)
    k = k.reshape(bsz, seq, num_heads, head_dim).transpose(0, 2, 1, 3)
    v = v.reshape(bsz, seq, num_heads, head_dim).transpose(0, 2, 1, 3)

    inv_freq = 1.0 / (pos_base ** (jnp.arange(0, head_dim, 2, dtype=jnp.float32)
                                   / head_dim))
    freqs = positions.astype(jnp.float32)[..., None] * inv_freq
    emb = jnp.concatenate([freqs, freqs], axis=-1)
    cos = jnp.cos(emb)[:, None]   # (bsz, 1, seq, D)
    sin = jnp.sin(emb)[:, None]

    def rope(x):
        half = head_dim // 2
        rot = jnp.concatenate([-x[..., half:], x[..., :half]], axis=-1)
        return x * cos + rot * sin

    q, k = rope(q), rope(k)
    logits = (q @ jnp.swapaxes(k, 2, 3)) / math.sqrt(head_dim)
    logits = logits + mask[:, None]
    w = jax.nn.softmax(logits, axis=-1)
    attn = w @ v
    attn = attn.transpose(0, 2, 1, 3).reshape(bsz, seq, num_heads * head_dim)
    return attn @ params["o_proj"].T, w


if __name__ == "__main__":
    # Small config consistent with the module: hidden=32, 2 heads of dim 16, seq=8.
    bsz, seq, hidden = 2, 8, 32
    num_heads, head_dim = 2, 16
    pos_base = 10000.0
    hd = num_heads * head_dim

    key = jax.random.PRNGKey(0)
    k_x, k_q, k_k, k_v, k_o = jax.random.split(key, 5)

    x = jax.random.normal(k_x, (bsz, seq, hidden), dtype=jnp.float32)
    params = {
        "q_proj": 0.05 * jax.random.normal(k_q, (hd, hidden), dtype=jnp.float32),
        "k_proj": 0.05 * jax.random.normal(k_k, (hd, hidden), dtype=jnp.float32),
        "v_proj": 0.05 * jax.random.normal(k_v, (hd, hidden), dtype=jnp.float32),
        "o_proj": 0.05 * jax.random.normal(k_o, (hidden, hd), dtype=jnp.float32),
    }

    positions = jnp.broadcast_to(jnp.arange(seq, dtype=jnp.int32), (bsz, seq))
    causal = jnp.tril(jnp.ones((seq, seq), dtype=bool))
    mask = jnp.where(causal, 0.0, -1e9).astype(jnp.float32)
    mask = jnp.broadcast_to(mask, (bsz, seq, seq))

    ref_out, ref_attw = _reference(x, mask, positions, params,
                                   num_heads=num_heads, head_dim=head_dim,
                                   pos_base=pos_base)

    # Exact (f32) path — matches the PyTorch eval-mode forward.
    out, attw = kelso_attention(x, mask, positions, params,
                                num_heads=num_heads, head_dim=head_dim,
                                pos_base=pos_base)
    jax.block_until_ready((out, attw))
    assert jnp.allclose(out, ref_out, atol=1e-4, rtol=1e-4)
    assert jnp.allclose(attw, ref_attw, atol=1e-4, rtol=1e-4)

    # Fast (bf16 MXU) path — same kernel, looser numerical tolerance.
    out_bf, attw_bf = kelso_attention(x, mask, positions, params,
                                      num_heads=num_heads, head_dim=head_dim,
                                      pos_base=pos_base,
                                      compute_dtype=jnp.bfloat16)
    jax.block_until_ready((out_bf, attw_bf))
    assert float(jnp.max(jnp.abs(out_bf - ref_out))) < 0.1
    assert float(jnp.max(jnp.abs(attw_bf - ref_attw))) < 0.1

    print("KERNEL_OK")
</pallas_src>

<mosaic_0001>
module attributes {stable_mosaic.version = 11 : i64} {
  func.func @kernel(%arg0: i32, %arg1: i32, %arg2: i32, %arg3: memref<1x8x32xf32, #tpu.memory_space<vmem>>, %arg4: memref<32x96xf32, #tpu.memory_space<vmem>>, %arg5: memref<2x16x32xf32, #tpu.memory_space<vmem>>, %arg6: memref<1x8x16xf32, #tpu.memory_space<vmem>>, %arg7: memref<1x8x16xf32, #tpu.memory_space<vmem>>, %arg8: memref<1x8x8xf32, #tpu.memory_space<vmem>>, %arg9: memref<1x8x32xf32, #tpu.memory_space<vmem>>, %arg10: memref<1x1x8x8xf32, #tpu.memory_space<vmem>>, %arg11: memref<2x8x16xf32, #tpu.memory_space<vmem>>, %arg12: memref<2x8x16xf32, #tpu.memory_space<vmem>>, %arg13: memref<2x8x16xf32, #tpu.memory_space<vmem>>, %arg14: memref<8x32xf32, #tpu.memory_space<vmem>>) attributes {dimension_semantics = [#tpu.dimension_semantics<parallel>, #tpu.dimension_semantics<arbitrary>, #tpu.dimension_semantics<arbitrary>], iteration_bounds = array<i64: 2, 1, 2>, scalar_prefetch = 0 : i64, scratch_operands = 4 : i64, tpu.core_type = #tpu.core_type<tc>, window_params = [{transform_indices = @transform_0, window_bounds = array<i64: 1, 8, 32>}, {pipeline_mode = #tpu.pipeline_mode<synchronous>, transform_indices = @transform_1, window_bounds = array<i64: 32, 96>}, {pipeline_mode = #tpu.pipeline_mode<synchronous>, transform_indices = @transform_2, window_bounds = array<i64: 2, 16, 32>}, {transform_indices = @transform_3, window_bounds = array<i64: 1, 8, 16>}, {transform_indices = @transform_4, window_bounds = array<i64: 1, 8, 16>}, {transform_indices = @transform_5, window_bounds = array<i64: 1, 8, 8>}, {transform_indices = @transform_6, window_bounds = array<i64: 1, 8, 32>}, {transform_indices = @transform_7, window_bounds = array<i64: 1, 1, 8, 8>}]} {
    %c0_i32 = arith.constant 0 : i32
    %0 = arith.cmpi eq, %arg1, %c0_i32 : i32
    %c0_i32_0 = arith.constant 0 : i32
    %1 = arith.cmpi eq, %arg2, %c0_i32_0 : i32
    %2 = arith.andi %0, %1 : i1
    %3 = arith.extui %2 : i1 to i32
    %c0_i32_1 = arith.constant 0 : i32
    %4 = arith.cmpi ne, %3, %c0_i32_1 : i32
    scf.if %4 {
      %c0_26 = arith.constant 0 : index
      %c0_27 = arith.constant 0 : index
      %c0_28 = arith.constant 0 : index
      %49 = vector.load %arg3[%c0_26, %c0_27, %c0_28] : memref<1x8x32xf32, #tpu.memory_space<vmem>>, vector<1x8x32xf32>
      %50 = vector.shape_cast %49 : vector<1x8x32xf32> to vector<8x32xf32>
      %c0_29 = arith.constant 0 : index
      %c0_30 = arith.constant 0 : index
      %51 = vector.load %arg4[%c0_29, %c0_30] : memref<32x96xf32, #tpu.memory_space<vmem>>, vector<32x96xf32>
      %cst_31 = arith.constant dense<0.000000e+00> : vector<8x96xf32>
      %52 = tpu.matmul %50, %51, %cst_31 {dimension_numbers = #tpu.dot_dimension_numbers<[1], [0], [0], [1], [0, 0, 1, 1], [], []>} : vector<8x32xf32>, vector<32x96xf32>, vector<8x96xf32> -> vector<8x96xf32>
      %c0_32 = arith.constant 0 : index
      %c0_33 = arith.constant 0 : index
      %c0_34 = arith.constant 0 : index
      %53 = vector.load %arg6[%c0_32, %c0_33, %c0_34] : memref<1x8x16xf32, #tpu.memory_space<vmem>>, vector<1x8x16xf32>
      %54 = vector.shape_cast %53 : vector<1x8x16xf32> to vector<8x16xf32>
      %c0_35 = arith.constant 0 : index
      %c0_36 = arith.constant 0 : index
      %c0_37 = arith.constant 0 : index
      %55 = vector.load %arg7[%c0_35, %c0_36, %c0_37] : memref<1x8x16xf32, #tpu.memory_space<vmem>>, vector<1x8x16xf32>
      %56 = vector.shape_cast %55 : vector<1x8x16xf32> to vector<8x16xf32>
      %57 = vector.extract_strided_slice %52 {offsets = [0, 0], sizes = [8, 16], strides = [1, 1]} : vector<8x96xf32> to vector<8x16xf32>
      %58 = vector.extract_strided_slice %52 {offsets = [0, 32], sizes = [8, 16], strides = [1, 1]} : vector<8x96xf32> to vector<8x16xf32>
      %59 = vector.extract_strided_slice %52 {offsets = [0, 64], sizes = [8, 16], strides = [1, 1]} : vector<8x96xf32> to vector<8x16xf32>
      %60 = vector.extract_strided_slice %57 {offsets = [0, 8], sizes = [8, 8], strides = [1, 1]} : vector<8x16xf32> to vector<8x8xf32>
      %cst_38 = arith.constant 0.000000e+00 : f32
      %61 = vector.broadcast %cst_38 : f32 to vector<8x8xf32>
      %62 = arith.subf %61, %60 : vector<8x8xf32>
      %63 = vector.extract_strided_slice %57 {offsets = [0, 0], sizes = [8, 8], strides = [1, 1]} : vector<8x16xf32> to vector<8x8xf32>
      %64 = tpu.concatenate %62, %63 in 1 : vector<8x8xf32>, vector<8x8xf32> -> vector<8x16xf32>
      %65 = vector.extract_strided_slice %58 {offsets = [0, 8], sizes = [8, 8], strides = [1, 1]} : vector<8x16xf32> to vector<8x8xf32>
      %cst_39 = arith.constant 0.000000e+00 : f32
      %66 = vector.broadcast %cst_39 : f32 to vector<8x8xf32>
      %67 = arith.subf %66, %65 : vector<8x8xf32>
      %68 = vector.extract_strided_slice %58 {offsets = [0, 0], sizes = [8, 8], strides = [1, 1]} : vector<8x16xf32> to vector<8x8xf32>
      %69 = tpu.concatenate %67, %68 in 1 : vector<8x8xf32>, vector<8x8xf32> -> vector<8x16xf32>
      %70 = arith.mulf %57, %54 : vector<8x16xf32>
      %71 = arith.mulf %64, %56 : vector<8x16xf32>
      %72 = arith.addf %70, %71 : vector<8x16xf32>
      %cst_40 = arith.constant 2.500000e-01 : f32
      %73 = vector.broadcast %cst_40 : f32 to vector<8x16xf32>
      %74 = arith.mulf %72, %73 : vector<8x16xf32>
      %c0_41 = arith.constant 0 : index
      %c0_42 = arith.constant 0 : index
      %c0_43 = arith.constant 0 : index
      %75 = vector.load %arg11[%c0_41, %c0_42, %c0_43] : memref<2x8x16xf32, #tpu.memory_space<vmem>>, vector<1x8x16xf32>
      %76 = vector.shape_cast %75 : vector<1x8x16xf32> to vector<8x16xf32>
      %77 = vector.shape_cast %74 : vector<8x16xf32> to vector<1x8x16xf32>
      tpu.vector_store %arg11[%c0_41, %c0_42, %c0_43], %77 {strides = array<i32>} : memref<2x8x16xf32, #tpu.memory_space<vmem>>, vector<1x8x16xf32>,
      %78 = arith.mulf %58, %54 : vector<8x16xf32>
      %79 = arith.mulf %69, %56 : vector<8x16xf32>
      %80 = arith.addf %78, %79 : vector<8x16xf32>
      %c0_44 = arith.constant 0 : index
      %c0_45 = arith.constant 0 : index
      %c0_46 = arith.constant 0 : index
      %81 = vector.load %arg12[%c0_44, %c0_45, %c0_46] : memref<2x8x16xf32, #tpu.memory_space<vmem>>, vector<1x8x16xf32>
      %82 = vector.shape_cast %81 : vector<1x8x16xf32> to vector<8x16xf32>
      %83 = vector.shape_cast %80 : vector<8x16xf32> to vector<1x8x16xf32>
      tpu.vector_store %arg12[%c0_44, %c0_45, %c0_46], %83 {strides = array<i32>} : memref<2x8x16xf32, #tpu.memory_space<vmem>>, vector<1x8x16xf32>,
      %c0_47 = arith.constant 0 : index
      %c0_48 = arith.constant 0 : index
      %c0_49 = arith.constant 0 : index
      %84 = vector.load %arg13[%c0_47, %c0_48, %c0_49] : memref<2x8x16xf32, #tpu.memory_space<vmem>>, vector<1x8x16xf32>
      %85 = vector.shape_cast %84 : vector<1x8x16xf32> to vector<8x16xf32>
      %86 = vector.shape_cast %59 : vector<8x16xf32> to vector<1x8x16xf32>
      tpu.vector_store %arg13[%c0_47, %c0_48, %c0_49], %86 {strides = array<i32>} : memref<2x8x16xf32, #tpu.memory_space<vmem>>, vector<1x8x16xf32>,
      %87 = vector.extract_strided_slice %52 {offsets = [0, 16], sizes = [8, 16], strides = [1, 1]} : vector<8x96xf32> to vector<8x16xf32>
      %88 = vector.extract_strided_slice %52 {offsets = [0, 48], sizes = [8, 16], strides = [1, 1]} : vector<8x96xf32> to vector<8x16xf32>
      %89 = vector.extract_strided_slice %52 {offsets = [0, 80], sizes = [8, 16], strides = [1, 1]} : vector<8x96xf32> to vector<8x16xf32>
      %90 = vector.extract_strided_slice %87 {offsets = [0, 8], sizes = [8, 8], strides = [1, 1]} : vector<8x16xf32> to vector<8x8xf32>
      %cst_50 = arith.constant 0.000000e+00 : f32
      %91 = vector.broadcast %cst_50 : f32 to vector<8x8xf32>
      %92 = arith.subf %91, %90 : vector<8x8xf32>
      %93 = vector.extract_strided_slice %87 {offsets = [0, 0], sizes = [8, 8], strides = [1, 1]} : vector<8x16xf32> to vector<8x8xf32>
      %94 = tpu.concatenate %92, %93 in 1 : vector<8x8xf32>, vector<8x8xf32> -> vector<8x16xf32>
      %95 = vector.extract_strided_slice %88 {offsets = [0, 8], sizes = [8, 8], strides = [1, 1]} : vector<8x16xf32> to vector<8x8xf32>
      %cst_51 = arith.constant 0.000000e+00 : f32
      %96 = vector.broadcast %cst_51 : f32 to vector<8x8xf32>
      %97 = arith.subf %96, %95 : vector<8x8xf32>
      %98 = vector.extract_strided_slice %88 {offsets = [0, 0], sizes = [8, 8], strides = [1, 1]} : vector<8x16xf32> to vector<8x8xf32>
      %99 = tpu.concatenate %97, %98 in 1 : vector<8x8xf32>, vector<8x8xf32> -> vector<8x16xf32>
      %100 = arith.mulf %87, %54 : vector<8x16xf32>
      %101 = arith.mulf %94, %56 : vector<8x16xf32>
      %102 = arith.addf %100, %101 : vector<8x16xf32>
      %cst_52 = arith.constant 2.500000e-01 : f32
      %103 = vector.broadcast %cst_52 : f32 to vector<8x16xf32>
      %104 = arith.mulf %102, %103 : vector<8x16xf32>
      %c1 = arith.constant 1 : index
      %c0_53 = arith.constant 0 : index
      %c0_54 = arith.constant 0 : index
      %105 = vector.load %arg11[%c1, %c0_53, %c0_54] : memref<2x8x16xf32, #tpu.memory_space<vmem>>, vector<1x8x16xf32>
      %106 = vector.shape_cast %105 : vector<1x8x16xf32> to vector<8x16xf32>
      %107 = vector.shape_cast %104 : vector<8x16xf32> to vector<1x8x16xf32>
      tpu.vector_store %arg11[%c1, %c0_53, %c0_54], %107 {strides = array<i32>} : memref<2x8x16xf32, #tpu.memory_space<vmem>>, vector<1x8x16xf32>,
      %108 = arith.mulf %88, %54 : vector<8x16xf32>
      %109 = arith.mulf %99, %56 : vector<8x16xf32>
      %110 = arith.addf %108, %109 : vector<8x16xf32>
      %c1_55 = arith.constant 1 : index
      %c0_56 = arith.constant 0 : index
      %c0_57 = arith.constant 0 : index
      %111 = vector.load %arg12[%c1_55, %c0_56, %c0_57] : memref<2x8x16xf32, #tpu.memory_space<vmem>>, vector<1x8x16xf32>
      %112 = vector.shape_cast %111 : vector<1x8x16xf32> to vector<8x16xf32>
      %113 = vector.shape_cast %110 : vector<8x16xf32> to vector<1x8x16xf32>
      tpu.vector_store %arg12[%c1_55, %c0_56, %c0_57], %113 {strides = array<i32>} : memref<2x8x16xf32, #tpu.memory_space<vmem>>, vector<1x8x16xf32>,
      %c1_58 = arith.constant 1 : index
      %c0_59 = arith.constant 0 : index
      %c0_60 = arith.constant 0 : index
      %114 = vector.load %arg13[%c1_58, %c0_59, %c0_60] : memref<2x8x16xf32, #tpu.memory_space<vmem>>, vector<1x8x16xf32>
      %115 = vector.shape_cast %114 : vector<1x8x16xf32> to vector<8x16xf32>
      %116 = vector.shape_cast %89 : vector<8x16xf32> to vector<1x8x16xf32>
      tpu.vector_store %arg13[%c1_58, %c0_59, %c0_60], %116 {strides = array<i32>} : memref<2x8x16xf32, #tpu.memory_space<vmem>>, vector<1x8x16xf32>,
    } else {
    }
    %c8_i32 = arith.constant 8 : i32
    %5 = arith.muli %arg1, %c8_i32 : i32
    %6 = tpu.assume_multiple %5, 8 : i32
    %7 = arith.index_cast %arg2 : i32 to index
    %8 = arith.index_cast %6 : i32 to index
    %c0 = arith.constant 0 : index
    %9 = vector.load %arg11[%7, %8, %c0] : memref<2x8x16xf32, #tpu.memory_space<vmem>>, vector<1x8x16xf32>
    %10 = vector.shape_cast %9 : vector<1x8x16xf32> to vector<8x16xf32>
    %11 = arith.index_cast %arg2 : i32 to index
    %c0_2 = arith.constant 0 : index
    %c0_3 = arith.constant 0 : index
    %12 = vector.load %arg12[%11, %c0_2, %c0_3] : memref<2x8x16xf32, #tpu.memory_space<vmem>>, vector<1x8x16xf32>
    %13 = vector.shape_cast %12 : vector<1x8x16xf32> to vector<8x16xf32>
    %14 = arith.index_cast %arg2 : i32 to index
    %c0_4 = arith.constant 0 : index
    %c0_5 = arith.constant 0 : index
    %15 = vector.load %arg13[%14, %c0_4, %c0_5] : memref<2x8x16xf32, #tpu.memory_space<vmem>>, vector<1x8x16xf32>
    %16 = vector.shape_cast %15 : vector<1x8x16xf32> to vector<8x16xf32>
    %17 = tpu.transpose %13, [1, 0] : vector<8x16xf32> -> vector<16x8xf32>
    %cst = arith.constant dense<0.000000e+00> : vector<8x8xf32>
    %18 = tpu.matmul %10, %17, %cst {dimension_numbers = #tpu.dot_dimension_numbers<[1], [0], [0], [1], [0, 0, 1, 1], [], []>} : vector<8x16xf32>, vector<16x8xf32>, vector<8x8xf32> -> vector<8x8xf32>
    %c0_6 = arith.constant 0 : index
    %c0_7 = arith.constant 0 : index
    %c0_8 = arith.constant 0 : index
    %19 = vector.load %arg8[%c0_6, %c0_7, %c0_8] : memref<1x8x8xf32, #tpu.memory_space<vmem>>, vector<1x8x8xf32>
    %20 = vector.shape_cast %19 : vector<1x8x8xf32> to vector<8x8xf32>
    %21 = arith.addf %18, %20 : vector<8x8xf32>
    %cst_9 = arith.constant dense<0xFF800000> : vector<8xf32>
    %22 = vector.multi_reduction <maximumf>, %21, %cst_9 [1] : vector<8x8xf32> to vector<8xf32>
    %23 = vector.shape_cast %22 : vector<8xf32> to vector<8x1xf32>
    %24 = vector.broadcast %23 : vector<8x1xf32> to vector<8x8xf32>
    %25 = arith.subf %21, %24 : vector<8x8xf32>
    %26 = math.exp %25 : vector<8x8xf32>
    %cst_10 = arith.constant dense<0.000000e+00> : vector<8xf32>
    %27 = vector.multi_reduction <add>, %26, %cst_10 [1] : vector<8x8xf32> to vector<8xf32>
    %28 = vector.shape_cast %27 : vector<8xf32> to vector<8x1xf32>
    %29 = tpu.reciprocal %28 : vector<8x1xf32> -> vector<8x1xf32>
    %30 = vector.broadcast %29 : vector<8x1xf32> to vector<8x8xf32>
    %31 = arith.mulf %26, %30 : vector<8x8xf32>
    %c0_11 = arith.constant 0 : index
    %c0_12 = arith.constant 0 : index
    %c0_13 = arith.constant 0 : index
    %c0_14 = arith.constant 0 : index
    %32 = vector.load %arg10[%c0_11, %c0_12, %c0_13, %c0_14] : memref<1x1x8x8xf32, #tpu.memory_space<vmem>>, vector<1x1x8x8xf32>
    %33 = vector.shape_cast %32 : vector<1x1x8x8xf32> to vector<8x8xf32>
    %34 = vector.shape_cast %31 : vector<8x8xf32> to vector<1x1x8x8xf32>
    tpu.vector_store %arg10[%c0_11, %c0_12, %c0_13, %c0_14], %34 {strides = array<i32>} : memref<1x1x8x8xf32, #tpu.memory_space<vmem>>, vector<1x1x8x8xf32>,
    %cst_15 = arith.constant dense<0.000000e+00> : vector<8x16xf32>
    %35 = tpu.matmul %31, %16, %cst_15 {dimension_numbers = #tpu.dot_dimension_numbers<[1], [0], [0], [1], [0, 0, 1, 1], [], []>} : vector<8x8xf32>, vector<8x16xf32>, vector<8x16xf32> -> vector<8x16xf32>
    %36 = arith.index_cast %arg2 : i32 to index
    %c0_16 = arith.constant 0 : index
    %c0_17 = arith.constant 0 : index
    %37 = vector.load %arg5[%36, %c0_16, %c0_17] : memref<2x16x32xf32, #tpu.memory_space<vmem>>, vector<1x16x32xf32>
    %38 = vector.shape_cast %37 : vector<1x16x32xf32> to vector<16x32xf32>
    %cst_18 = arith.constant dense<0.000000e+00> : vector<8x32xf32>
    %39 = tpu.matmul %35, %38, %cst_18 {dimension_numbers = #tpu.dot_dimension_numbers<[1], [0], [0], [1], [0, 0, 1, 1], [], []>} : vector<8x16xf32>, vector<16x32xf32>, vector<8x32xf32> -> vector<8x32xf32>
    %c0_i32_19 = arith.constant 0 : i32
    %40 = arith.cmpi eq, %arg2, %c0_i32_19 : i32
    %41 = arith.extui %40 : i1 to i32
    %c0_i32_20 = arith.constant 0 : i32
    %42 = arith.cmpi ne, %41, %c0_i32_20 : i32
    scf.if %42 {
      %cst_26 = arith.constant 0.000000e+00 : f32
      %49 = vector.broadcast %cst_26 : f32 to vector<8x32xf32>
      %c0_27 = arith.constant 0 : index
      %c0_28 = arith.constant 0 : index
      %50 = vector.load %arg14[%c0_27, %c0_28] : memref<8x32xf32, #tpu.memory_space<vmem>>, vector<8x32xf32>
      tpu.vector_store %arg14[%c0_27, %c0_28], %49 {strides = array<i32>} : memref<8x32xf32, #tpu.memory_space<vmem>>, vector<8x32xf32>,
    } else {
    }
    %c0_21 = arith.constant 0 : index
    %c0_22 = arith.constant 0 : index
    %43 = vector.load %arg14[%c0_21, %c0_22] : memref<8x32xf32, #tpu.memory_space<vmem>>, vector<8x32xf32>
    %44 = arith.addf %43, %39 : vector<8x32xf32>
    %c0_23 = arith.constant 0 : index
    %c0_24 = arith.constant 0 : index
    %45 = vector.load %arg14[%c0_23, %c0_24] : memref<8x32xf32, #tpu.memory_space<vmem>>, vector<8x32xf32>
    tpu.vector_store %arg14[%c0_23, %c0_24], %44 {strides = array<i32>} : memref<8x32xf32, #tpu.memory_space<vmem>>, vector<8x32xf32>,
    %c1_i32 = arith.constant 1 : i32
    %46 = arith.cmpi eq, %arg2, %c1_i32 : i32
    %47 = arith.extui %46 : i1 to i32
    %c0_i32_25 = arith.constant 0 : i32
    %48 = arith.cmpi ne, %47, %c0_i32_25 : i32
    scf.if %48 {
      %c0_26 = arith.constant 0 : index
      %c0_27 = arith.constant 0 : index
      %49 = vector.load %arg14[%c0_26, %c0_27] : memref<8x32xf32, #tpu.memory_space<vmem>>, vector<8x32xf32>
      %c0_28 = arith.constant 0 : index
      %c0_29 = arith.constant 0 : index
      %c0_30 = arith.constant 0 : index
      %50 = vector.load %arg9[%c0_28, %c0_29, %c0_30] : memref<1x8x32xf32, #tpu.memory_space<vmem>>, vector<1x8x32xf32>
      %51 = vector.shape_cast %50 : vector<1x8x32xf32> to vector<8x32xf32>
      %52 = vector.shape_cast %49 : vector<8x32xf32> to vector<1x8x32xf32>
      tpu.vector_store %arg9[%c0_28, %c0_29, %c0_30], %52 {strides = array<i32>} : memref<1x8x32xf32, #tpu.memory_space<vmem>>, vector<1x8x32xf32>,
    } else {
    }
    return
  }
  func.func @transform_0(%arg0: i32, %arg1: i32, %arg2: i32) -> (i32, i32, i32) {
    %c0_i32 = arith.constant 0 : i32
    %c0_i32_0 = arith.constant 0 : i32
    %c0_i32_1 = arith.constant 0 : i32
    return %arg0, %c0_i32, %c0_i32_0 : i32, i32, i32
  }
  func.func @transform_1(%arg0: i32, %arg1: i32, %arg2: i32) -> (i32, i32) {
    %c0_i32 = arith.constant 0 : i32
    %c0_i32_0 = arith.constant 0 : i32
    %c0_i32_1 = arith.constant 0 : i32
    return %c0_i32, %c0_i32_0 : i32, i32
  }
  func.func @transform_2(%arg0: i32, %arg1: i32, %arg2: i32) -> (i32, i32, i32) {
    %c0_i32 = arith.constant 0 : i32
    %c0_i32_0 = arith.constant 0 : i32
    %c0_i32_1 = arith.constant 0 : i32
    %c0_i32_2 = arith.constant 0 : i32
    return %c0_i32, %c0_i32_0, %c0_i32_1 : i32, i32, i32
  }
  func.func @transform_3(%arg0: i32, %arg1: i32, %arg2: i32) -> (i32, i32, i32) {
    %c0_i32 = arith.constant 0 : i32
    %c0_i32_0 = arith.constant 0 : i32
    %c0_i32_1 = arith.constant 0 : i32
    return %arg0, %c0_i32, %c0_i32_0 : i32, i32, i32
  }
  func.func @transform_4(%arg0: i32, %arg1: i32, %arg2: i32) -> (i32, i32, i32) {
    %c0_i32 = arith.constant 0 : i32
    %c0_i32_0 = arith.constant 0 : i32
    %c0_i32_1 = arith.constant 0 : i32
    return %arg0, %c0_i32, %c0_i32_0 : i32, i32, i32
  }
  func.func @transform_5(%arg0: i32, %arg1: i32, %arg2: i32) -> (i32, i32, i32) {
    %c0_i32 = arith.constant 0 : i32
    %c0_i32_0 = arith.constant 0 : i32
    return %arg0, %arg1, %c0_i32 : i32, i32, i32
  }
  func.func @transform_6(%arg0: i32, %arg1: i32, %arg2: i32) -> (i32, i32, i32) {
    %c0_i32 = arith.constant 0 : i32
    %c0_i32_0 = arith.constant 0 : i32
    return %arg0, %arg1, %c0_i32 : i32, i32, i32
  }
  func.func @transform_7(%arg0: i32, %arg1: i32, %arg2: i32) -> (i32, i32, i32, i32) {
    %c0_i32 = arith.constant 0 : i32
    %c0_i32_0 = arith.constant 0 : i32
    return %arg0, %arg2, %arg1, %c0_i32 : i32, i32, i32, i32
  }
}

</mosaic_0001>

<llo_original>
// kernel: tpu_custom_call.1
$region0: #{tpu_custom_call.1}
  #allocation0 [shape = 'u32[]', space=smem, size = 0x4, offset = 0x4, fixed_abs, tag = 'smem constant byte address 0x4 - core index']
  #allocation1 [shape = 'u32[144,128]{1,0:T(1,128)}', space=vmem, size = 0x12000, scoped, tag = 'internal scratch']
  #allocation2 [shape = 'f32[2,8,16]{2,1,0:T(8,128)}', space=vmem, size = 0x2000, scoped, tag = 'scratch operand']
  #allocation3 [shape = 'f32[2,8,16]{2,1,0:T(8,128)}', space=vmem, size = 0x2000, scoped, tag = 'scratch operand']
  #allocation4 [shape = 'f32[2,8,16]{2,1,0:T(8,128)}', space=vmem, size = 0x2000, scoped, tag = 'scratch operand']
  #allocation5 [shape = 'f32[8,32]{1,0:T(8,128)}', space=vmem, size = 0x1000, scoped, tag = 'scratch operand']
  %s0 = inlined_call_operand.hbm [shape: f32[2,8,32], index: 0, kind: input, shape index: {}]
  %s1 = inlined_call_operand.hbm [shape: f32[32,96], index: 1, kind: input, shape index: {}]
  %s2 = inlined_call_operand.hbm [shape: f32[2,16,32], index: 2, kind: input, shape index: {}]
  %s3 = inlined_call_operand.hbm [shape: f32[2,8,16], index: 3, kind: input, shape index: {}]
  %s4 = inlined_call_operand.hbm [shape: f32[2,8,16], index: 4, kind: input, shape index: {}]
  %s5 = inlined_call_operand.vmem [shape: f32[2,8,8], index: 5, kind: input, shape index: {}]
  %s6 = inlined_call_operand.hbm [shape: f32[2,8,32], index: 6, kind: output, shape index: {0}]
  %s7 = inlined_call_operand.hbm [shape: f32[2,2,8,8], index: 7, kind: output, shape index: {1}]
  %8 = xla_tuple %s6, %s7
  %s9 = sld [smem:[#allocation0]]
  $region97: #{tpu_custom_call.1} parent=0
    _
  %s11 = ssub.s32 1, %s9
  %s12 = scalar_select 0, %s11, %s9
  $region1: #{tpu_custom_call.1} parent=0
    #allocation6 [shape = 'u8[8192]{0}', space=vmem, size = 0x2000, scoped, tag = 'input window, operand 0']
    #allocation7 [shape = 's32[2]{0}', space=sflag, size = 0x8, scoped, tag = 'scoped memory for tpu_custom_call.1']
    #allocation8 [shape = 's32[2]{0}', space=sflag, size = 0x8, scoped, tag = 'scoped memory for tpu_custom_call.1']
    #allocation9 [shape = 'u8[16384]{0}', space=vmem, size = 0x4000, scoped, tag = 'input window, operand 1, single buffered']
    #allocation10 [shape = 's32[1]{0}', space=sflag, size = 0x4, scoped, tag = 'scoped memory for tpu_custom_call.1']
    #allocation11 [shape = 'u8[16384]{0}', space=vmem, size = 0x4000, scoped, tag = 'input window, operand 2, single buffered']
    #allocation12 [shape = 'u8[8192]{0}', space=vmem, size = 0x2000, scoped, tag = 'input window, operand 3']
    #allocation13 [shape = 's32[2]{0}', space=sflag, size = 0x8, scoped, tag = 'scoped memory for tpu_custom_call.1']
    #allocation14 [shape = 'u8[8192]{0}', space=vmem, size = 0x2000, scoped, tag = 'input window, operand 4']
    #allocation15 [shape = 'u8[8192]{0}', space=vmem, size = 0x2000, scoped, tag = 'output window, operand 0']
    #allocation16 [shape = 'u8[8192]{0}', space=vmem, size = 0x2000, scoped, tag = 'output window, operand 1']
    #allocation17 [shape = 's32[2]{0}', space=sflag, size = 0x8, scoped, tag = 'scoped memory for tpu_custom_call.1']
    %13 = vsyncpa [#allocation7], 0
    %s14 = scalar_lea.sflag [#allocation7], 1
    %15 = vsyncpa %s14, 0
    %16 = vsyncpa [#allocation10], 0
    %17 = vsyncpa [#allocation13], 0
    %s18 = scalar_lea.sflag [#allocation13], 1
    %19 = vsyncpa %s18, 0
    %20 = vsyncpa [#allocation8], 0
    %s21 = scalar_lea.sflag [#allocation8], 1
    %22 = vsyncpa %s21, 0
    %23 = vsyncpa [#allocation17], 0
    %s24 = scalar_lea.sflag [#allocation17], 1
    %25 = vsyncpa %s24, 0
    loop: start=0, step=1, limit=6
    $region2: #{tpu_custom_call.1} parent=1 // loop_pre_header
      _
    $region3: #{tpu_custom_call.1} parent=1 // loop_header
      %s27 = sphi 0, %s31
      %p28 = scmp.ge.s32.totalorder %s27, 6
      %s34 = sphi 0, %s53
      %s35 = sphi 0, %s49
      %s36 = sphi 0, %s45
      %s37 = sphi 0, %s34
      %s38 = sphi 0, %s35
      %s39 = sphi 0, %s36
      %s40 = sphi 0, %s37
      %s41 = sphi 0, %s38
      %s42 = sphi 0, %s39
      %s56 = sphi 0, %s58
      %s59 = sphi 0, %s56
      %s60 = sphi 0, %s59
      %s76 = sphi 0, %s60
      %s80 = sphi 0, %s80
      %s82 = sphi 0, %s80
      %s83 = sphi 0, %s82
      %s97 = sphi 0, %s83
      %s101 = sphi 0, %s101
      %s103 = sphi 0, %s101
      %s104 = sphi 0, %s103
      %s118 = sphi 0, %s104
      %s124 = sphi 0, %s126
      %s127 = sphi 0, %s124
      %s128 = sphi 0, %s127
      %s144 = sphi 0, %s128
      %s150 = sphi 0, %s152
      %s153 = sphi 0, %s150
      %s154 = sphi 0, %s153
      %s170 = sphi 0, %s154
      %s178 = sphi 0, %s180
      %s181 = sphi 0, %s178
      %s182 = sphi 0, %s181
      %s198 = sphi 0, %s182
      %s206 = sphi 0, %s208
      %s209 = sphi 0, %s206
      %s210 = sphi 0, %s209
      %s226 = sphi 0, %s210
      %s236 = sphi 0, %s238
      %s239 = sphi 0, %s236
      %s240 = sphi 0, %s239
      %s256 = sphi 0, %s240
    $region4: #{tpu_custom_call.1} parent=1 // loop_header_branch
      %30 = sbr.rel (%p28) target = $region8
    $region5: #{tpu_custom_call.1} parent=1 // loop_body
      %s32 = ssub.s32 %s27, 1
      %s33 = ssub.s32 %s27, 2
      %s43 = sadd.s32 1, %s36
      %p44 = scmp.ge.s32.totalorder %s43, 2
      %s45 = scalar_select %p44, 0, %s43
      %s46 = sadd.s32 1, %s35
      %s47 = scalar_select %p44, %s46, %s35
      %p48 = scmp.ge.s32.totalorder %s47, 1
      %s49 = scalar_select %p48, 0, %s47
      %s50 = sadd.s32 1, %s34
      %s51 = scalar_select %p48, %s50, %s34
      %p52 = scmp.ge.s32.totalorder %s51, 2
      %s53 = scalar_select %p52, 0, %s51
      %s54 = ssub.s32 %s34, %s53
      %p55 = scmp.eq.s32.totalorder %s54, 0
      %s57 = sadd.s32 %s56, 1
      %s58 = scalar_select %p55, %s56, %s57
      %p61 = pneg %p55
      %p62 = scmp.eq.s32.totalorder %s27, 3
      %p63 = por %p61, %p62
      %p64 = scmp.ne.s32.totalorder %s56, %s59
      %p65 = scmp.eq.s32.totalorder %s27, 0
      %p66 = por %p64, %p65
      %p67 = scmp.ne.s32.totalorder %s56, %s59
      %p68 = scmp.eq.s32.totalorder %s32, 3
      %p69 = por %p67, %p68
      %p70 = scmp.ne.s32.totalorder %s59, %s60
      %p71 = scmp.eq.s32.totalorder %s32, 0
      %p72 = por %p70, %p71
      %p73 = scmp.ne.s32.totalorder %s59, %s60
      %p74 = scmp.eq.s32.totalorder %s33, 3
      %p75 = por %p73, %p74
      %p77 = scmp.ne.s32.totalorder %s60, %s76
      %p78 = scmp.eq.s32.totalorder %s33, 0
      %p79 = por %p77, %p78
      %s81 = sadd.s32 %s80, 1
      %p84 = scmp.eq.s32.totalorder %s27, 3
      %p85 = scmp.ne.s32.totalorder %s80, %s82
      %p86 = scmp.eq.s32.totalorder %s27, 0
      %p87 = por %p85, %p86
      %p88 = scmp.ne.s32.totalorder %s80, %s82
      %p89 = scmp.eq.s32.totalorder %s32, 3
      %p90 = por %p88, %p89
      %p91 = scmp.ne.s32.totalorder %s82, %s83
      %p92 = scmp.eq.s32.totalorder %s32, 0
      %p93 = por %p91, %p92
      %p94 = scmp.ne.s32.totalorder %s82, %s83
      %p95 = scmp.eq.s32.totalorder %s33, 3
      %p96 = por %p94, %p95
      %p98 = scmp.ne.s32.totalorder %s83, %s97
      %p99 = scmp.eq.s32.totalorder %s33, 0
      %p100 = por %p98, %p99
      %s102 = sadd.s32 %s101, 1
      %p105 = scmp.eq.s32.totalorder %s27, 3
      %p106 = scmp.ne.s32.totalorder %s101, %s103
      %p107 = scmp.eq.s32.totalorder %s27, 0
      %p108 = por %p106, %p107
      %p109 = scmp.ne.s32.totalorder %s101, %s103
      %p110 = scmp.eq.s32.totalorder %s32, 3
      %p111 = por %p109, %p110
      %p112 = scmp.ne.s32.totalorder %s103, %s104
      %p113 = scmp.eq.s32.totalorder %s32, 0
      %p114 = por %p112, %p113
      %p115 = scmp.ne.s32.totalorder %s103, %s104
      %p116 = scmp.eq.s32.totalorder %s33, 3
      %p117 = por %p115, %p116
      %p119 = scmp.ne.s32.totalorder %s104, %s118
      %p120 = scmp.eq.s32.totalorder %s33, 0
      %p121 = por %p119, %p120
      %s122 = ssub.s32 %s34, %s53
      %p123 = scmp.eq.s32.totalorder %s122, 0
      %s125 = sadd.s32 %s124, 1
      %s126 = scalar_select %p123, %s124, %s125
      %p129 = pneg %p123
      %p130 = scmp.eq.s32.totalorder %s27, 3
      %p131 = por %p129, %p130
      %p132 = scmp.ne.s32.totalorder %s124, %s127
      %p133 = scmp.eq.s32.totalorder %s27, 0
      %p134 = por %p132, %p133
      %p135 = scmp.ne.s32.totalorder %s124, %s127
      %p136 = scmp.eq.s32.totalorder %s32, 3
      %p137 = por %p135, %p136
      %p138 = scmp.ne.s32.totalorder %s127, %s128
      %p139 = scmp.eq.s32.totalorder %s32, 0
      %p140 = por %p138, %p139
      %p141 = scmp.ne.s32.totalorder %s127, %s128
      %p142 = scmp.eq.s32.totalorder %s33, 3
      %p143 = por %p141, %p142
      %p145 = scmp.ne.s32.totalorder %s128, %s144
      %p146 = scmp.eq.s32.totalorder %s33, 0
      %p147 = por %p145, %p146
      %s148 = ssub.s32 %s34, %s53
      %p149 = scmp.eq.s32.totalorder %s148, 0
      %s151 = sadd.s32 %s150, 1
      %s152 = scalar_select %p149, %s150, %s151
      %p155 = pneg %p149
      %p156 = scmp.eq.s32.totalorder %s27, 3
      %p157 = por %p155, %p156
      %p158 = scmp.ne.s32.totalorder %s150, %s153
      %p159 = scmp.eq.s32.totalorder %s27, 0
      %p160 = por %p158, %p159
      %p161 = scmp.ne.s32.totalorder %s150, %s153
      %p162 = scmp.eq.s32.totalorder %s32, 3
      %p163 = por %p161, %p162
      %p164 = scmp.ne.s32.totalorder %s153, %s154
      %p165 = scmp.eq.s32.totalorder %s32, 0
      %p166 = por %p164, %p165
      %p167 = scmp.ne.s32.totalorder %s153, %s154
      %p168 = scmp.eq.s32.totalorder %s33, 3
      %p169 = por %p167, %p168
      %p171 = scmp.ne.s32.totalorder %s154, %s170
      %p172 = scmp.eq.s32.totalorder %s33, 0
      %p173 = por %p171, %p172
      %s174 = ssub.s32 %s34, %s53
      %s175 = ssub.s32 %s35, %s49
      %s176 = sor.u32 %s174, %s175
      %p177 = scmp.eq.s32.totalorder %s176, 0
      %s179 = sadd.s32 %s178, 1
      %s180 = scalar_select %p177, %s178, %s179
      %p183 = pneg %p177
      %p184 = scmp.eq.s32.totalorder %s27, 3
      %p185 = por %p183, %p184
      %p186 = scmp.ne.s32.totalorder %s178, %s181
      %p187 = scmp.eq.s32.totalorder %s27, 0
      %p188 = por %p186, %p187
      %p189 = scmp.ne.s32.totalorder %s178, %s181
      %p190 = scmp.eq.s32.totalorder %s32, 3
      %p191 = por %p189, %p190
      %p192 = scmp.ne.s32.totalorder %s181, %s182
      %p193 = scmp.eq.s32.totalorder %s32, 0
      %p194 = por %p192, %p193
      %p195 = scmp.ne.s32.totalorder %s181, %s182
      %p196 = scmp.eq.s32.totalorder %s33, 3
      %p197 = por %p195, %p196
      %p199 = scmp.ne.s32.totalorder %s182, %s198
      %p200 = scmp.eq.s32.totalorder %s33, 0
      %p201 = por %p199, %p200
      %s202 = ssub.s32 %s34, %s53
      %s203 = ssub.s32 %s35, %s49
      %s204 = sor.u32 %s202, %s203
      %p205 = scmp.eq.s32.totalorder %s204, 0
      %s207 = sadd.s32 %s206, 1
      %s208 = scalar_select %p205, %s206, %s207
      %p211 = pneg %p205
      %p212 = scmp.eq.s32.totalorder %s27, 3
      %p213 = por %p211, %p212
      %p214 = scmp.ne.s32.totalorder %s206, %s209
      %p215 = scmp.eq.s32.totalorder %s27, 0
      %p216 = por %p214, %p215
      %p217 = scmp.ne.s32.totalorder %s206, %s209
      %p218 = scmp.eq.s32.totalorder %s32, 3
      %p219 = por %p217, %p218
      %p220 = scmp.ne.s32.totalorder %s209, %s210
      %p221 = scmp.eq.s32.totalorder %s32, 0
      %p222 = por %p220, %p221
      %p223 = scmp.ne.s32.totalorder %s209, %s210
      %p224 = scmp.eq.s32.totalorder %s33, 3
      %p225 = por %p223, %p224
      %p227 = scmp.ne.s32.totalorder %s210, %s226
      %p228 = scmp.eq.s32.totalorder %s33, 0
      %p229 = por %p227, %p228
      %s230 = ssub.s32 %s34, %s53
      %s231 = ssub.s32 %s36, %s45
      %s232 = sor.u32 %s230, %s231
      %s233 = ssub.s32 %s35, %s49
      %s234 = sor.u32 %s232, %s233
      %p235 = scmp.eq.s32.totalorder %s234, 0
      %s237 = sadd.s32 %s236, 1
      %s238 = scalar_select %p235, %s236, %s237
      %p241 = pneg %p235
      %p242 = scmp.eq.s32.totalorder %s27, 3
      %p243 = por %p241, %p242
      %p244 = scmp.ne.s32.totalorder %s236, %s239
      %p245 = scmp.eq.s32.totalorder %s27, 0
      %p246 = por %p244, %p245
      %p247 = scmp.ne.s32.totalorder %s236, %s239
      %p248 = scmp.eq.s32.totalorder %s32, 3
      %p249 = por %p247, %p248
      %p250 = scmp.ne.s32.totalorder %s239, %s240
      %p251 = scmp.eq.s32.totalorder %s32, 0
      %p252 = por %p250, %p251
      %p253 = scmp.ne.s32.totalorder %s239, %s240
      %p254 = scmp.eq.s32.totalorder %s33, 3
      %p255 = por %p253, %p254
      %p257 = scmp.ne.s32.totalorder %s240, %s256
      %p258 = scmp.eq.s32.totalorder %s33, 0
      %p259 = por %p257, %p258
      %p260 = scmp.le.s32.totalorder 1, %s27
      %p261 = scmp.lt.s32.totalorder %s27, 5
      %p262 = pnand %p260, %p261
      %p263 = pneg %p262
      // Predicated region
      $region9: #{tpu_custom_call.1} parent=5 // pred_check
        _
      $region10: #{tpu_custom_call.1} parent=5 // pred_check_branch
        %265 = sbr.rel (%p262) target = $region12
      $region11: #{tpu_custom_call.1} parent=5 // pred_region
        %s266 = ssub.s32 %s27, 1
        // Predicated region
        $region13: #{tpu_custom_call.1} parent=11 // pred_check
          %p267 = pneg %p93
        $region14: #{tpu_custom_call.1} parent=11 // pred_check_branch
          %269 = sbr.rel (%p267) target = $region16
        $region15: #{tpu_custom_call.1} parent=11 // pred_region
          %s271 = ssub.s32 512, 512
          %272 = vsyncadd [#allocation10], %s271
          %s273 = sshll.u32 [#allocation9], 4
          %s274 = int_to_ptr.vmem [resolvable:$true] %s273
          %279 = dma.hbm_to_vmem [thread:$0]  %s1, 512, %s274, [#allocation10], 128, 128, 8
        $region16: #{tpu_custom_call.1} parent=11 // pred_fallthru
          _
        // Predicated region
        $region17: #{tpu_custom_call.1} parent=11 // pred_check
          %p280 = pneg %p114
        $region18: #{tpu_custom_call.1} parent=11 // pred_check_branch
          %282 = sbr.rel (%p280) target = $region20
        $region19: #{tpu_custom_call.1} parent=11 // pred_region
          %s284 = ssub.s32 512, 512
          %285 = vsyncadd [#allocation10], %s284
          %s286 = sshll.u32 [#allocation11], 4
          %s287 = int_to_ptr.vmem [resolvable:$true] %s286
          %292 = dma.hbm_to_vmem [thread:$0]  %s2, 512, %s287, [#allocation10], 128, 128, 8
        $region20: #{tpu_custom_call.1} parent=11 // pred_fallthru
          _
      $region12: #{tpu_custom_call.1} parent=5 // pred_fallthru
        _
      %p293 = scmp.lt.s32.totalorder %s27, 4
      // Predicated region
      $region21: #{tpu_custom_call.1} parent=5 // pred_check
        %p294 = pneg %p293
      $region22: #{tpu_custom_call.1} parent=5 // pred_check_branch
        %296 = sbr.rel (%p294) target = $region24
      $region23: #{tpu_custom_call.1} parent=5 // pred_region
        // Predicated region
        $region25: #{tpu_custom_call.1} parent=23 // pred_check
          %p297 = pneg %p66
        $region26: #{tpu_custom_call.1} parent=23 // pred_check_branch
          %299 = sbr.rel (%p297) target = $region28
        $region27: #{tpu_custom_call.1} parent=23 // pred_region
          %s300 = sand.u32 %s56, 1
          %s301 = scalar_lea.sflag [#allocation7], %s300
          %s302 = sand.u32 %s56, 1
          %s303 = smul.addr %s302, 8
          %s304 = scalar_lea.vmem [#allocation6], %s303
          %s306 = ssub.s32 128, 128
          %307 = vsyncadd %s301, %s306
          %s308 = smul.addr %s34, 128
          %s309 = scalar_lea.hbm %s0, %s308
          %s311 = sshll.u32 %s304, 4
          %s312 = int_to_ptr.vmem [resolvable:$true] %s311
          %314 = dma.hbm_to_vmem [thread:$0]  %s309, 128, %s312, %s301
        $region28: #{tpu_custom_call.1} parent=23 // pred_fallthru
          _
        // Predicated region
        $region29: #{tpu_custom_call.1} parent=23 // pred_check
          %p315 = pneg %p134
        $region30: #{tpu_custom_call.1} parent=23 // pred_check_branch
          %317 = sbr.rel (%p315) target = $region32
        $region31: #{tpu_custom_call.1} parent=23 // pred_region
          %s318 = sand.u32 %s27, 1
          %s319 = scalar_lea.sflag [#allocation13], %s318
          %s320 = sand.u32 %s124, 1
          %s321 = smul.addr %s320, 8
          %s322 = scalar_lea.vmem [#allocation12], %s321
          %s324 = ssub.s32 128, 128
          %325 = vsyncadd %s319, %s324
          %s326 = smul.addr %s34, 128
          %s327 = scalar_lea.hbm %s3, %s326
          %s329 = sshll.u32 %s322, 4
          %s330 = int_to_ptr.vmem [resolvable:$true] %s329
          %332 = dma.hbm_to_vmem [thread:$0]  %s327, 128, %s330, %s319
        $region32: #{tpu_custom_call.1} parent=23 // pred_fallthru
          _
        // Predicated region
        $region33: #{tpu_custom_call.1} parent=23 // pred_check
          %p333 = pneg %p160
        $region34: #{tpu_custom_call.1} parent=23 // pred_check_branch
          %335 = sbr.rel (%p333) target = $region36
        $region35: #{tpu_custom_call.1} parent=23 // pred_region
          %s336 = sand.u32 %s27, 1
          %s337 = scalar_lea.sflag [#allocation13], %s336
          %s338 = sand.u32 %s150, 1
          %s339 = smul.addr %s338, 8
          %s340 = scalar_lea.vmem [#allocation14], %s339
          %s342 = ssub.s32 128, 128
          %343 = vsyncadd %s337, %s342
          %s344 = smul.addr %s34, 128
          %s345 = scalar_lea.hbm %s4, %s344
          %s347 = sshll.u32 %s340, 4
          %s348 = int_to_ptr.vmem [resolvable:$true] %s347
          %350 = dma.hbm_to_vmem [thread:$0]  %s345, 128, %s348, %s337
        $region36: #{tpu_custom_call.1} parent=23 // pred_fallthru
          _
        // Predicated region
        $region37: #{tpu_custom_call.1} parent=23 // pred_check
          %p351 = pneg %p188
        $region38: #{tpu_custom_call.1} parent=23 // pred_check_branch
          %353 = sbr.rel (%p351) target = $region40
        $region39: #{tpu_custom_call.1} parent=23 // pred_region
          %p354 = scmp.lt.s32.totalorder %s34, 1
          %s355 = scalar_select %p354, %s34, 1
          %p356 = scmp.lt.s32.totalorder %s35, 0
          %s357 = scalar_select %p356, %s35, 0
          %s358 = sadd.s32 %s357, %s355
          %s359 = smul.addr %s358, 8
          %s360 = scalar_lea.vmem %s5, %s359
        $region40: #{tpu_custom_call.1} parent=23 // pred_fallthru
          _
      $region24: #{tpu_custom_call.1} parent=5 // pred_fallthru
        _
      %p361 = scmp.le.s32.totalorder 1, %s27
      %p362 = scmp.lt.s32.totalorder %s27, 5
      %p363 = pnand %p361, %p362
      %p364 = pneg %p363
      // Predicated region
      $region41: #{tpu_custom_call.1} parent=5 // pred_check
        _
      $region42: #{tpu_custom_call.1} parent=5 // pred_check_branch
        %366 = sbr.rel (%p363) target = $region44
      $region43: #{tpu_custom_call.1} parent=5 // pred_region
        %s367 = ssub.s32 %s27, 1
        %s368 = sand.u32 %s59, 1
        %s369 = scalar_lea.sflag [#allocation7], %s368
        %s370 = sand.u32 %s59, 1
        %s371 = smul.addr %s370, 8
        %s372 = scalar_lea.vmem [#allocation6], %s371
        // Predicated region
        $region45: #{tpu_custom_call.1} parent=43 // pred_check
          %p373 = pneg %p72
        $region46: #{tpu_custom_call.1} parent=43 // pred_check_branch
          %375 = sbr.rel (%p373) target = $region48
        $region47: #{tpu_custom_call.1} parent=43 // pred_region
          %376 = dma.done %s369, 128
        $region48: #{tpu_custom_call.1} parent=43 // pred_fallthru
          _
        // Predicated region
        $region49: #{tpu_custom_call.1} parent=43 // pred_check
          %p377 = pneg %p93
        $region50: #{tpu_custom_call.1} parent=43 // pred_check_branch
          %379 = sbr.rel (%p377) target = $region52
        $region51: #{tpu_custom_call.1} parent=43 // pred_region
          %380 = dma.done [#allocation10], 512
        $region52: #{tpu_custom_call.1} parent=43 // pred_fallthru
          _
        // Predicated region
        $region53: #{tpu_custom_call.1} parent=43 // pred_check
          %p381 = pneg %p114
        $region54: #{tpu_custom_call.1} parent=43 // pred_check_branch
          %383 = sbr.rel (%p381) target = $region56
        $region55: #{tpu_custom_call.1} parent=43 // pred_region
          %384 = dma.done [#allocation10], 512
        $region56: #{tpu_custom_call.1} parent=43 // pred_fallthru
          _
        %s385 = sand.u32 %s32, 1
        %s386 = scalar_lea.sflag [#allocation13], %s385
        %s387 = sand.u32 %s127, 1
        %s388 = smul.addr %s387, 8
        %s389 = scalar_lea.vmem [#allocation12], %s388
        // Predicated region
        $region57: #{tpu_custom_call.1} parent=43 // pred_check
          %p390 = pneg %p140
        $region58: #{tpu_custom_call.1} parent=43 // pred_check_branch
          %392 = sbr.rel (%p390) target = $region60
        $region59: #{tpu_custom_call.1} parent=43 // pred_region
          %393 = dma.done %s386, 128
        $region60: #{tpu_custom_call.1} parent=43 // pred_fallthru
          _
        %s394 = sand.u32 %s32, 1
        %s395 = scalar_lea.sflag [#allocation13], %s394
        %s396 = sand.u32 %s153, 1
        %s397 = smul.addr %s396, 8
        %s398 = scalar_lea.vmem [#allocation14], %s397
        // Predicated region
        $region61: #{tpu_custom_call.1} parent=43 // pred_check
          %p399 = pneg %p166
        $region62: #{tpu_custom_call.1} parent=43 // pred_check_branch
          %401 = sbr.rel (%p399) target = $region64
        $region63: #{tpu_custom_call.1} parent=43 // pred_region
          %402 = dma.done %s395, 128
        $region64: #{tpu_custom_call.1} parent=43 // pred_fallthru
          _
        %s403 = sand.u32 %s59, 1
        %s404 = scalar_lea.sflag [#allocation7], %s403
        %s405 = sand.u32 %s59, 1
        %s406 = smul.addr %s405, 8
        %s407 = scalar_lea.vmem [#allocation6], %s406
        %p408 = pneg %p72
        %p409 = pneg %p69
        %p410 = pneg %p93
        %p411 = pneg %p90
        %p412 = pneg %p114
        %p413 = pneg %p111
        %s414 = sand.u32 %s32, 1
        %s415 = scalar_lea.sflag [#allocation13], %s414
        %s416 = sand.u32 %s127, 1
        %s417 = smul.addr %s416, 8
        %s418 = scalar_lea.vmem [#allocation12], %s417
        %p419 = pneg %p140
        %p420 = pneg %p137
        %s421 = sand.u32 %s32, 1
        %s422 = scalar_lea.sflag [#allocation13], %s421
        %s423 = sand.u32 %s153, 1
        %s424 = smul.addr %s423, 8
        %s425 = scalar_lea.vmem [#allocation14], %s424
        %p426 = pneg %p166
        %p427 = pneg %p163
        %p428 = scmp.lt.s32.totalorder %s37, 1
        %s429 = scalar_select %p428, %s37, 1
        %p430 = scmp.lt.s32.totalorder %s38, 0
        %s431 = scalar_select %p430, %s38, 0
        %s432 = sadd.s32 %s431, %s429
        %s433 = smul.addr %s432, 8
        %s434 = scalar_lea.vmem %s5, %s433
        %p435 = pneg %p194
        %p436 = pneg %p191
        %p437 = pneg %p222
        %p438 = pneg %p219
        %s439 = sand.u32 %s209, 1
        %s440 = scalar_lea.sflag [#allocation8], %s439
        %s441 = sand.u32 %s209, 1
        %s442 = smul.addr %s441, 8
        %s443 = scalar_lea.vmem [#allocation15], %s442
        %p444 = pneg %p252
        %p445 = pneg %p249
        %s446 = sand.u32 %s239, 1
        %s447 = scalar_lea.sflag [#allocation17], %s446
        %s448 = sand.u32 %s239, 1
        %s449 = smul.addr %s448, 8
        %s450 = scalar_lea.vmem [#allocation16], %s449
        %p451 = scmp.lt.s32.totalorder %s37, 1
        %s452 = scalar_select %p451, %s37, 1
        %p453 = scmp.lt.s32.totalorder %s38, 0
        %s454 = scalar_select %p453, %s38, 0
        %s455 = sadd.s32 %s454, %s452
        %s456 = smul.addr %s455, 8
        %s457 = scalar_lea.vmem %s5, %s456
        %p458 = scmp.eq.s32.totalorder %s38, 0
        %p459 = scmp.eq.s32.totalorder %s39, 0
        %p460 = pnand %p458, %p459
        %p461 = pneg %p460
        // Predicated region
        $region65: #{tpu_custom_call.1} parent=43 // pred_check
          _
        $region66: #{tpu_custom_call.1} parent=43 // pred_check_branch
          %463 = sbr.rel (%p460) target = $region68
        $region67: #{tpu_custom_call.1} parent=43 // pred_region
          %v464 = vld [vmem:[%s372] sm:$0xff]
          %v465 = vld [vmem:[#allocation9] sm:$0xff]
          %v466 = vld [vmem:[#allocation9 + $0x8] sm:$0xff]
          %v467 = vld [vmem:[#allocation9 + $0x10] sm:$0xff]
          %v468 = vld [vmem:[#allocation9 + $0x18] sm:$0xff]
          %vm469 = vcmask 261120
          %v471 = vsel %vm469, %v464, 0
          %473 = vmatprep.subr.mxu0 0.0
          %474 = vmatpush1.msra.mxu0 %v465
          %475 = vmatprep.subr.mxu0 0.0
          %476 = vmatpush1.msra.mxu0 %v466
          %477 = vmatprep.subr.mxu0 0.0
          %478 = vmatpush1.msra.mxu0 %v467
          %479 = vmatprep.subr.mxu0 0.0
          %480 = vmatpush1.msra.mxu0 %v468
          %481 = vmatprep.subr.mxu0 0.0
          %482 = vmatpush1.msra.mxu0 0.0
          %483 = vmatprep.subr.mxu0 0.0
          %484 = vmatpush1.msra.mxu0 0.0
          %485 = vmatprep.subr.mxu0 0.0
          %486 = vmatpush1.msra.mxu0 0.0
          %487 = vmatprep.subr.mxu0 0.0
          %488 = vmatpush1.msra.mxu0 0.0
          %489 = vmatprep.subr.mxu0 0.0
          %490 = vmatpush1.msra.mxu0 0.0
          %491 = vmatprep.subr.mxu0 0.0
          %492 = vmatpush1.msra.mxu0 0.0
          %493 = vmatprep.subr.mxu0 0.0
          %494 = vmatpush1.msra.mxu0 0.0
          %495 = vmatprep.subr.mxu0 0.0
          %496 = vmatpush1.msra.mxu0 0.0
          %497 = vmatprep.subr.mxu0 0.0
          %498 = vmatpush1.msra.mxu0 0.0
          %499 = vmatprep.subr.mxu0 0.0
          %500 = vmatpush1.msra.mxu0 0.0
          %501 = vmatprep.subr.mxu0 0.0
          %502 = vmatpush1.msra.mxu0 0.0
          %503 = vmatprep.subr.mxu0 0.0
          %504 = vmatpush1.msra.mxu0 0.0
          %505 = vmatprep.subr.mxu0 0.0
          %506 = vmatpush1.msra.mxu0 0.0
          %507 = vmatprep.subr.mxu0 0.0
          %508 = vmatpush1.msra.mxu0 0.0
          %509 = vmatprep.subr.mxu0 0.0
          %510 = vmatpush1.msra.mxu0 0.0
          %511 = vmatprep.subr.mxu0 0.0
          %512 = vmatpush1.msra.mxu0 0.0
          %513 = vmatprep.subr.mxu0 0.0
          %514 = vmatpush1.msra.mxu0 0.0
          %515 = vmatprep.subr.mxu0 0.0
          %516 = vmatpush1.msra.mxu0 0.0
          %517 = vmatprep.subr.mxu0 0.0
          %518 = vmatpush1.msra.mxu0 0.0
          %519 = vmatprep.subr.mxu0 0.0
          %520 = vmatpush1.msra.mxu0 0.0
          %521 = vmatprep.subr.mxu0 0.0
          %522 = vmatpush1.msra.mxu0 0.0
          %523 = vmatprep.subr.mxu0 0.0
          %524 = vmatpush1.msra.mxu0 0.0
          %525 = vmatprep.subr.mxu0 0.0
          %526 = vmatpush1.msra.mxu0 0.0
          %527 = vmatprep.subr.mxu0 0.0
          %528 = vmatpush1.msra.mxu0 0.0
          %529 = vmatprep.subr.mxu0 0.0
          %530 = vmatpush1.msra.mxu0 0.0
          %531 = vmatprep.subr.mxu0 0.0
          %532 = vmatpush1.msra.mxu0 0.0
          %533 = vmatprep.subr.mxu0 0.0
          %534 = vmatpush1.msra.mxu0 0.0
          %535 = vmatprep.subr.mxu0 0.0
          %536 = vmatpush1.msra.mxu0 0.0
          %537 = vmatprep.mubr.f32.mxu0 0.0
          %538 = vmatmul.mubr.f32.gmra.mrb[0].mxu0 %v471
          %v539 = vpop.f32.mrb[0].mxu0
          %v540 = vadd.f32 0.0, %v539
          %v541 = vpop.f32.mrb[0].mxu0
          %542 = vdwg.mxu0
          %v543 = vld [vmem:[%s389] sm:$0xff]
          %v544 = vld [vmem:[%s398] sm:$0xff]
          %v545 = vsub.f32 0.0, %v540
          %547 = vrot.lane.b32.xlu0 %v545, 120
          %v548 = vpop.permute.xlu0 %547
          %551 = vrot.lane.b32.xlu0 %v540, 8
          %v552 = vpop.permute.xlu0 %551
          %vm554 = vcmask 64512
          %v555 = vsel %vm554, %v548, %v552
          %556 = vrot.lane.b32.xlu0 %v545, 88
          %v557 = vpop.permute.xlu0 %556
          %559 = vrot.lane.b32.xlu0 %v540, 104
          %v560 = vpop.permute.xlu0 %559
          %v562 = vsel %vm554, %v557, %v560
          %v563 = vmul.f32 %v540, %v543
          %v564 = vmul.f32 %v555, %v544
          %v565 = vadd.f32 %v563, %v564
          %v566 = vmul.f32 %v565, 0.25
          %vm567 = vcmask 130048
          %568 = vst.msk [vmem:[#allocation2] sm:$0xff] %vm567, %v566
          %570 = vrot.lane.b32.xlu0 %v543, 32
          %v571 = vpop.permute.xlu0 %570
          %v573 = vmul.f32 %v540, %v571
          %v574 = vmul.f32 %v562, %v544
          %576 = vrot.lane.b32.xlu0 %v574, 32
          %v577 = vpop.permute.xlu0 %576
          %v579 = vadd.f32 %v573, %v577
          %581 = vrot.lane.b32.xlu0 %v579, 96
          %v582 = vpop.permute.xlu0 %581
          %584 = vst.msk [vmem:[#allocation3] sm:$0xff] %vm567, %v582
          %585 = vrot.lane.b32.xlu0 %v540, 64
          %v586 = vpop.permute.xlu0 %585
          %588 = vst.msk [vmem:[#allocation4] sm:$0xff] %vm567, %v586
          %589 = vrot.lane.b32.xlu0 %v545, 104
          %v590 = vpop.permute.xlu0 %589
          %592 = vrot.lane.b32.xlu0 %v540, 120
          %v593 = vpop.permute.xlu0 %592
          %v595 = vsel %vm554, %v590, %v593
          %596 = vrot.lane.b32.xlu0 %v545, 72
          %v597 = vpop.permute.xlu0 %596
          %599 = vrot.lane.b32.xlu0 %v540, 88
          %v600 = vpop.permute.xlu0 %599
          %v602 = vsel %vm554, %v597, %v600
          %603 = vrot.lane.b32.xlu0 %v543, 16
          %v604 = vpop.permute.xlu0 %603
          %v606 = vmul.f32 %v540, %v604
          %v607 = vmul.f32 %v595, %v544
          %609 = vrot.lane.b32.xlu0 %v607, 16
          %v610 = vpop.permute.xlu0 %609
          %v612 = vadd.f32 %v606, %v610
          %v613 = vmul.f32 %v612, 0.25
          %615 = vrot.lane.b32.xlu0 %v613, 112
          %v616 = vpop.permute.xlu0 %615
          %s618 = scalar_lea.vmem [#allocation2], 8
          %619 = vst.msk [vmem:[%s618] sm:$0xff] %vm567, %v616
          %620 = vrot.lane.b32.xlu0 %v543, 48
          %v621 = vpop.permute.xlu0 %620
          %v623 = vmul.f32 %v540, %v621
          %v624 = vmul.f32 %v602, %v544
          %626 = vrot.lane.b32.xlu0 %v624, 48
          %v627 = vpop.permute.xlu0 %626
          %v629 = vadd.f32 %v623, %v627
          %631 = vrot.lane.b32.xlu0 %v629, 80
          %v632 = vpop.permute.xlu0 %631
          %s634 = scalar_lea.vmem [#allocation3], 8
          %635 = vst.msk [vmem:[%s634] sm:$0xff] %vm567, %v632
          %636 = vrot.lane.b32.xlu0 %v540, 48
          %v637 = vpop.permute.xlu0 %636
          %s639 = scalar_lea.vmem [#allocation4], 8
          %640 = vst.msk [vmem:[%s639] sm:$0xff] %vm567, %v637
        $region68: #{tpu_custom_call.1} parent=43 // pred_fallthru
          _
        %s641 = smul.u32 %s38, 8
        %s642 = smul.u32 %s39, 8
        %s643 = sadd.s32 %s641, %s642
        %s644 = scalar_lea.vmem [#allocation2], %s643
        %v645 = vld [vmem:[%s644] sm:$0xff]
        %s646 = scalar_lea.vmem [#allocation3], %s642
        %v647 = vld [vmem:[%s646] sm:$0xff]
        %s648 = scalar_lea.vmem [#allocation4], %s642
        %v649 = vld [vmem:[%s648] sm:$0xff]
        %v650 = vld [vmem:[%s457] sm:$0xff]
        %vm651 = vcmask 130048
        %v653 = vsel %vm651, %v645, 0
        %v656 = vsel %vm651, %v647, 0
        %658 = vmatprep.subr.mxu0 0.0
        %659 = vmatpush1.xpose.msra.mxu0 %v656
        %660 = vmatprep.subr.mxu0 0.0
        %661 = vmatpush1.xpose.msra.mxu0 0.0
        %662 = vmatprep.subr.mxu0 0.0
        %663 = vmatpush1.xpose.msra.mxu0 0.0
        %664 = vmatprep.subr.mxu0 0.0
        %665 = vmatpush1.xpose.msra.mxu0 0.0
        %666 = vmatprep.subr.mxu0 0.0
        %667 = vmatpush1.xpose.msra.mxu0 0.0
        %668 = vmatprep.subr.mxu0 0.0
        %669 = vmatpush1.xpose.msra.mxu0 0.0
        %670 = vmatprep.subr.mxu0 0.0
        %671 = vmatpush1.xpose.msra.mxu0 0.0
        %672 = vmatprep.subr.mxu0 0.0
        %673 = vmatpush1.xpose.msra.mxu0 0.0
        %674 = vmatprep.subr.mxu0 0.0
        %675 = vmatpush1.xpose.msra.mxu0 0.0
        %676 = vmatprep.subr.mxu0 0.0
        %677 = vmatpush1.xpose.msra.mxu0 0.0
        %678 = vmatprep.subr.mxu0 0.0
        %679 = vmatpush1.xpose.msra.mxu0 0.0
        %680 = vmatprep.subr.mxu0 0.0
        %681 = vmatpush1.xpose.msra.mxu0 0.0
        %682 = vmatprep.subr.mxu0 0.0
        %683 = vmatpush1.xpose.msra.mxu0 0.0
        %684 = vmatprep.subr.mxu0 0.0
        %685 = vmatpush1.xpose.msra.mxu0 0.0
        %686 = vmatprep.subr.mxu0 0.0
        %687 = vmatpush1.xpose.msra.mxu0 0.0
        %688 = vmatprep.subr.mxu0 0.0
        %689 = vmatpush1.xpose.msra.mxu0 0.0
        %690 = vmatprep.subr.mxu0 0.0
        %691 = vmatpush1.xpose.msra.mxu0 0.0
        %692 = vmatprep.subr.mxu0 0.0
        %693 = vmatpush1.xpose.msra.mxu0 0.0
        %694 = vmatprep.subr.mxu0 0.0
        %695 = vmatpush1.xpose.msra.mxu0 0.0
        %696 = vmatprep.subr.mxu0 0.0
        %697 = vmatpush1.xpose.msra.mxu0 0.0
        %698 = vmatprep.subr.mxu0 0.0
        %699 = vmatpush1.xpose.msra.mxu0 0.0
        %700 = vmatprep.subr.mxu0 0.0
        %701 = vmatpush1.xpose.msra.mxu0 0.0
        %702 = vmatprep.subr.mxu0 0.0
        %703 = vmatpush1.xpose.msra.mxu0 0.0
        %704 = vmatprep.subr.mxu0 0.0
        %705 = vmatpush1.xpose.msra.mxu0 0.0
        %706 = vmatprep.subr.mxu0 0.0
        %707 = vmatpush1.xpose.msra.mxu0 0.0
        %708 = vmatprep.subr.mxu0 0.0
        %709 = vmatpush1.xpose.msra.mxu0 0.0
        %710 = vmatprep.subr.mxu0 0.0
        %711 = vmatpush1.xpose.msra.mxu0 0.0
        %712 = vmatprep.subr.mxu0 0.0
        %713 = vmatpush1.xpose.msra.mxu0 0.0
        %714 = vmatprep.subr.mxu0 0.0
        %715 = vmatpush1.xpose.msra.mxu0 0.0
        %716 = vmatprep.subr.mxu0 0.0
        %717 = vmatpush1.xpose.msra.mxu0 0.0
        %718 = vmatprep.subr.mxu0 0.0
        %719 = vmatpush1.xpose.msra.mxu0 0.0
        %720 = vmatprep.subr.mxu0 0.0
        %721 = vmatpush1.xpose.msra.mxu0 0.0
        %722 = vmatprep.mubr.f32.mxu0 0.0
        %723 = vmatmul.mubr.f32.gmra.mrb[0].mxu0 %v653
        %v724 = vpop.f32.mrb[0].mxu0
        %v725 = vadd.f32 %v650, %v724
        %v726 = vpop.f32.mrb[0].mxu0
        %727 = vdwg.mxu0
        %vm728 = vcmask 64512
        %v729 = vsel %vm728, %v725, -inf
        %730 = vmax.xlane.f32.xlu0 %v729
        %v731 = vpop.xlane.xlu0 %730
        %v732 = vsub.f32 %v725, %v731
        %v733 = vmul.f32 %v732, 1.442695
        %v734 = vpow.pop %v733
        %v735 = vsel %vm728, %v734, 0.0
        %736 = vadd.xlane.f32.xlu0 %v735
        %v737 = vpop.xlane.xlu0 %736
        %v738 = vrcp.pop %v737
        %v739 = vmul.f32 %v734, %v738
        %740 = vst.msk [vmem:[%s450] sm:$0xff] %vm728, %v739
        %v742 = vsel %vm728, %v739, 0
        %744 = vmatprep.subr.mxu0 0.0
        %745 = vmatpush1.msra.mxu0 %v649
        %746 = vmatprep.subr.mxu0 0.0
        %747 = vmatpush1.msra.mxu0 0.0
        %748 = vmatprep.subr.mxu0 0.0
        %749 = vmatpush1.msra.mxu0 0.0
        %750 = vmatprep.subr.mxu0 0.0
        %751 = vmatpush1.msra.mxu0 0.0
        %752 = vmatprep.subr.mxu0 0.0
        %753 = vmatpush1.msra.mxu0 0.0
        %754 = vmatprep.subr.mxu0 0.0
        %755 = vmatpush1.msra.mxu0 0.0
        %756 = vmatprep.subr.mxu0 0.0
        %757 = vmatpush1.msra.mxu0 0.0
        %758 = vmatprep.subr.mxu0 0.0
        %759 = vmatpush1.msra.mxu0 0.0
        %760 = vmatprep.subr.mxu0 0.0
        %761 = vmatpush1.msra.mxu0 0.0
        %762 = vmatprep.subr.mxu0 0.0
        %763 = vmatpush1.msra.mxu0 0.0
        %764 = vmatprep.subr.mxu0 0.0
        %765 = vmatpush1.msra.mxu0 0.0
        %766 = vmatprep.subr.mxu0 0.0
        %767 = vmatpush1.msra.mxu0 0.0
        %768 = vmatprep.subr.mxu0 0.0
        %769 = vmatpush1.msra.mxu0 0.0
        %770 = vmatprep.subr.mxu0 0.0
        %771 = vmatpush1.msra.mxu0 0.0
        %772 = vmatprep.subr.mxu0 0.0
        %773 = vmatpush1.msra.mxu0 0.0
        %774 = vmatprep.subr.mxu0 0.0
        %775 = vmatpush1.msra.mxu0 0.0
        %776 = vmatprep.subr.mxu0 0.0
        %777 = vmatpush1.msra.mxu0 0.0
        %778 = vmatprep.subr.mxu0 0.0
        %779 = vmatpush1.msra.mxu0 0.0
        %780 = vmatprep.subr.mxu0 0.0
        %781 = vmatpush1.msra.mxu0 0.0
        %782 = vmatprep.subr.mxu0 0.0
        %783 = vmatpush1.msra.mxu0 0.0
        %784 = vmatprep.subr.mxu0 0.0
        %785 = vmatpush1.msra.mxu0 0.0
        %786 = vmatprep.subr.mxu0 0.0
        %787 = vmatpush1.msra.mxu0 0.0
        %788 = vmatprep.subr.mxu0 0.0
        %789 = vmatpush1.msra.mxu0 0.0
        %790 = vmatprep.subr.mxu0 0.0
        %791 = vmatpush1.msra.mxu0 0.0
        %792 = vmatprep.subr.mxu0 0.0
        %793 = vmatpush1.msra.mxu0 0.0
        %794 = vmatprep.subr.mxu0 0.0
        %795 = vmatpush1.msra.mxu0 0.0
        %796 = vmatprep.subr.mxu0 0.0
        %797 = vmatpush1.msra.mxu0 0.0
        %798 = vmatprep.subr.mxu0 0.0
        %799 = vmatpush1.msra.mxu0 0.0
        %800 = vmatprep.subr.mxu0 0.0
        %801 = vmatpush1.msra.mxu0 0.0
        %802 = vmatprep.subr.mxu0 0.0
        %803 = vmatpush1.msra.mxu0 0.0
        %804 = vmatprep.subr.mxu0 0.0
        %805 = vmatpush1.msra.mxu0 0.0
        %806 = vmatprep.subr.mxu0 0.0
        %807 = vmatpush1.msra.mxu0 0.0
        %808 = vmatprep.mubr.f32.mxu0 0.0
        %809 = vmatmul.mubr.f32.gmra.mrb[0].mxu0 %v742
        %v810 = vpop.f32.mrb[0].mxu0
        %v811 = vadd.f32 0.0, %v810
        %v812 = vpop.f32.mrb[0].mxu0
        %813 = vdwg.mxu0
        %s814 = smul.u32 %s39, 16
        %s815 = scalar_lea.vmem [#allocation11], %s814
        %v816 = vld [vmem:[%s815] sm:$0xff]
        %v817 = vld [vmem:[%s815 + $0x8] sm:$0xff]
        %v819 = vsel %vm651, %v811, 0
        %821 = vmatprep.subr.mxu0 0.0
        %822 = vmatpush1.msra.mxu0 %v816
        %823 = vmatprep.subr.mxu0 0.0
        %824 = vmatpush1.msra.mxu0 %v817
        %825 = vmatprep.subr.mxu0 0.0
        %826 = vmatpush1.msra.mxu0 0.0
        %827 = vmatprep.subr.mxu0 0.0
        %828 = vmatpush1.msra.mxu0 0.0
        %829 = vmatprep.subr.mxu0 0.0
        %830 = vmatpush1.msra.mxu0 0.0
        %831 = vmatprep.subr.mxu0 0.0
        %832 = vmatpush1.msra.mxu0 0.0
        %833 = vmatprep.subr.mxu0 0.0
        %834 = vmatpush1.msra.mxu0 0.0
        %835 = vmatprep.subr.mxu0 0.0
        %836 = vmatpush1.msra.mxu0 0.0
        %837 = vmatprep.subr.mxu0 0.0
        %838 = vmatpush1.msra.mxu0 0.0
        %839 = vmatprep.subr.mxu0 0.0
        %840 = vmatpush1.msra.mxu0 0.0
        %841 = vmatprep.subr.mxu0 0.0
        %842 = vmatpush1.msra.mxu0 0.0
        %843 = vmatprep.subr.mxu0 0.0
        %844 = vmatpush1.msra.mxu0 0.0
        %845 = vmatprep.subr.mxu0 0.0
        %846 = vmatpush1.msra.mxu0 0.0
        %847 = vmatprep.subr.mxu0 0.0
        %848 = vmatpush1.msra.mxu0 0.0
        %849 = vmatprep.subr.mxu0 0.0
        %850 = vmatpush1.msra.mxu0 0.0
        %851 = vmatprep.subr.mxu0 0.0
        %852 = vmatpush1.msra.mxu0 0.0
        %853 = vmatprep.subr.mxu0 0.0
        %854 = vmatpush1.msra.mxu0 0.0
        %855 = vmatprep.subr.mxu0 0.0
        %856 = vmatpush1.msra.mxu0 0.0
        %857 = vmatprep.subr.mxu0 0.0
        %858 = vmatpush1.msra.mxu0 0.0
        %859 = vmatprep.subr.mxu0 0.0
        %860 = vmatpush1.msra.mxu0 0.0
        %861 = vmatprep.subr.mxu0 0.0
        %862 = vmatpush1.msra.mxu0 0.0
        %863 = vmatprep.subr.mxu0 0.0
        %864 = vmatpush1.msra.mxu0 0.0
        %865 = vmatprep.subr.mxu0 0.0
        %866 = vmatpush1.msra.mxu0 0.0
        %867 = vmatprep.subr.mxu0 0.0
        %868 = vmatpush1.msra.mxu0 0.0
        %869 = vmatprep.subr.mxu0 0.0
        %870 = vmatpush1.msra.mxu0 0.0
        %871 = vmatprep.subr.mxu0 0.0
        %872 = vmatpush1.msra.mxu0 0.0
        %873 = vmatprep.subr.mxu0 0.0
        %874 = vmatpush1.msra.mxu0 0.0
        %875 = vmatprep.subr.mxu0 0.0
        %876 = vmatpush1.msra.mxu0 0.0
        %877 = vmatprep.subr.mxu0 0.0
        %878 = vmatpush1.msra.mxu0 0.0
        %879 = vmatprep.subr.mxu0 0.0
        %880 = vmatpush1.msra.mxu0 0.0
        %881 = vmatprep.subr.mxu0 0.0
        %882 = vmatpush1.msra.mxu0 0.0
        %883 = vmatprep.subr.mxu0 0.0
        %884 = vmatpush1.msra.mxu0 0.0
        %885 = vmatprep.mubr.f32.mxu0 0.0
        %886 = vmatmul.mubr.f32.gmra.mrb[0].mxu0 %v819
        %v887 = vpop.f32.mrb[0].mxu0
        %v888 = vadd.f32 0.0, %v887
        %v889 = vpop.f32.mrb[0].mxu0
        %890 = vdwg.mxu0
        // Predicated region
        $region69: #{tpu_custom_call.1} parent=43 // pred_check
          %p891 = pneg %p459
        $region70: #{tpu_custom_call.1} parent=43 // pred_check_branch
          %893 = sbr.rel (%p891) target = $region72
        $region71: #{tpu_custom_call.1} parent=43 // pred_region
          %vm894 = vcmask 261120
          %895 = vst.msk [vmem:[#allocation5] sm:$0xff] %vm894, 0.0
        $region72: #{tpu_custom_call.1} parent=43 // pred_fallthru
          _
        %v896 = vld [vmem:[#allocation5] sm:$0xff]
        %v897 = vadd.f32 %v896, %v888
        %vm898 = vcmask 261120
        %899 = vst.msk [vmem:[#allocation5] sm:$0xff] %vm898, %v897
        %p900 = scmp.eq.s32.totalorder %s39, 1
        // Predicated region
        $region73: #{tpu_custom_call.1} parent=43 // pred_check
          %p901 = pneg %p900
        $region74: #{tpu_custom_call.1} parent=43 // pred_check_branch
          %903 = sbr.rel (%p901) target = $region76
        $region75: #{tpu_custom_call.1} parent=43 // pred_region
          %v904 = vld [vmem:[#allocation5] sm:$0xff]
          %905 = vst.msk [vmem:[%s443] sm:$0xff] %vm898, %v904
        $region76: #{tpu_custom_call.1} parent=43 // pred_fallthru
          _
        %s906 = sand.u32 %s209, 1
        %s907 = scalar_lea.sflag [#allocation8], %s906
        %s908 = sand.u32 %s209, 1
        %s909 = smul.addr %s908, 8
        %s910 = scalar_lea.vmem [#allocation15], %s909
        %s911 = sand.u32 %s239, 1
        %s912 = scalar_lea.sflag [#allocation17], %s911
        %s913 = sand.u32 %s239, 1
        %s914 = smul.addr %s913, 8
        %s915 = scalar_lea.vmem [#allocation16], %s914
        // Predicated region
        $region77: #{tpu_custom_call.1} parent=43 // pred_check
          %p916 = pneg %p219
        $region78: #{tpu_custom_call.1} parent=43 // pred_check_branch
          %918 = sbr.rel (%p916) target = $region80
        $region79: #{tpu_custom_call.1} parent=43 // pred_region
          %s920 = ssub.s32 128, 128
          %921 = vsyncadd %s907, %s920
          %s922 = sadd.s32 %s38, %s37
          %s923 = smul.addr %s922, 128
          %s924 = scalar_lea.hbm %s6, %s923
          %s926 = sshll.u32 %s910, 4
          %s927 = int_to_ptr.vmem [resolvable:$true] %s926
          %929 = dma.vmem_to_hbm [thread:$0]  %s927, 128, %s924, %s907
        $region80: #{tpu_custom_call.1} parent=43 // pred_fallthru
          _
        // Predicated region
        $region81: #{tpu_custom_call.1} parent=43 // pred_check
          %p930 = pneg %p249
        $region82: #{tpu_custom_call.1} parent=43 // pred_check_branch
          %932 = sbr.rel (%p930) target = $region84
        $region83: #{tpu_custom_call.1} parent=43 // pred_region
          %s934 = ssub.s32 128, 128
          %935 = vsyncadd %s912, %s934
          %s936 = sadd.s32 %s38, %s39
          %s937 = smul.addr %s37, 2
          %s938 = sadd.s32 %s936, %s937
          %s939 = smul.addr %s938, 128
          %s940 = scalar_lea.hbm %s7, %s939
          %s942 = sshll.u32 %s915, 4
          %s943 = int_to_ptr.vmem [resolvable:$true] %s942
          %945 = dma.vmem_to_hbm [thread:$0]  %s943, 128, %s940, %s912
        $region84: #{tpu_custom_call.1} parent=43 // pred_fallthru
          _
      $region44: #{tpu_custom_call.1} parent=5 // pred_fallthru
        _
      %p946 = scmp.le.s32.totalorder 2, %s27
      // Predicated region
      $region85: #{tpu_custom_call.1} parent=5 // pred_check
        %p947 = pneg %p946
      $region86: #{tpu_custom_call.1} parent=5 // pred_check_branch
        %949 = sbr.rel (%p947) target = $region88
      $region87: #{tpu_custom_call.1} parent=5 // pred_region
        %s950 = ssub.s32 %s27, 2
        // Predicated region
        $region89: #{tpu_custom_call.1} parent=87 // pred_check
          %p951 = pneg %p225
        $region90: #{tpu_custom_call.1} parent=87 // pred_check_branch
          %953 = sbr.rel (%p951) target = $region92
        $region91: #{tpu_custom_call.1} parent=87 // pred_region
          %s954 = sand.u32 %s210, 1
          %s955 = scalar_lea.sflag [#allocation8], %s954
          %s956 = sand.u32 %s210, 1
          %s957 = smul.addr %s956, 8
          %s958 = scalar_lea.vmem [#allocation15], %s957
          %959 = dma.done %s955, 128
        $region92: #{tpu_custom_call.1} parent=87 // pred_fallthru
          _
        // Predicated region
        $region93: #{tpu_custom_call.1} parent=87 // pred_check
          %p960 = pneg %p255
        $region94: #{tpu_custom_call.1} parent=87 // pred_check_branch
          %962 = sbr.rel (%p960) target = $region96
        $region95: #{tpu_custom_call.1} parent=87 // pred_region
          %s963 = sand.u32 %s240, 1
          %s964 = scalar_lea.sflag [#allocation17], %s963
          %s965 = sand.u32 %s240, 1
          %s966 = smul.addr %s965, 8
          %s967 = scalar_lea.vmem [#allocation16], %s966
          %968 = dma.done %s964, 128
        $region96: #{tpu_custom_call.1} parent=87 // pred_fallthru
          _
      $region88: #{tpu_custom_call.1} parent=5 // pred_fallthru
        _
    $region6: #{tpu_custom_call.1} parent=1 // loop_footer
      %s31 = sadd.s32 1, %s27
    $region7: #{tpu_custom_call.1} parent=1 // loop_footer_branch
      %26 = sbr.rel target = $region3
    $region8: #{tpu_custom_call.1} parent=1 // loop_exit
      _
    %969 = vsyncpa [#allocation7], 1
    %s970 = scalar_lea.sflag [#allocation7], 1
    %971 = vsyncpa %s970, 1
    %972 = vsyncpa [#allocation10], 1
    %973 = vsyncpa [#allocation13], 1
    %s974 = scalar_lea.sflag [#allocation13], 1
    %975 = vsyncpa %s974, 1
    %976 = vsyncpa [#allocation8], 1
    %s977 = scalar_lea.sflag [#allocation8], 1
    %978 = vsyncpa %s977, 1
    %979 = vsyncpa [#allocation17], 1
    %s980 = scalar_lea.sflag [#allocation17], 1
    %981 = vsyncpa %s980, 1

</llo_original>
